<compile_context>
chip_gen: v7x
topology: tpu7x:2x2x1
jax: 0.10.0
libtpu: 0.0.40
codegen_flags: <defaults>
</compile_context>

<pallas_src>
import functools

import jax
import jax.numpy as jnp
from jax import lax
from jax.experimental import pallas as pl
from jax.experimental.pallas import tpu as pltpu

NUM_CLASSES = 3
_LANES = 128


def _round_up(x, m):
    return ((x + m - 1) // m) * m


def _focal_loss_kernel(w_ref, a_ref, x_ref, t_ref, out_ref, acc_ref, *,
                       gamma, n_valid, block_rows, num_classes):
    """One grid step: block_rows*128 batch elements; classes fully unrolled."""
    i = pl.program_id(0)

    @pl.when(i == 0)
    def _init():
        acc_ref[...] = jnp.zeros_like(acc_ref)

    t = t_ref[...]                                       # (R, 128) int32
    rows = [x_ref[k] for k in range(num_classes)]        # each (R, 128) f32

    # --- numerically stable log-softmax over classes (unrolled, VPU/EUP only) ---
    m = rows[0]
    for r in rows[1:]:
        m = jnp.maximum(m, r)
    s = jnp.exp(rows[0] - m)
    for r in rows[1:]:
        s = s + jnp.exp(r - m)
    lse = jnp.log(s)                                     # (R, 128)

    # --- target-class gather via lane-wise select chains (no XLU reductions) ---
    ones = jnp.ones_like(m)
    x_t = rows[num_classes - 1]
    w_t = w_ref[num_classes - 1] * ones                  # SMEM scalar broadcast
    a_t = a_ref[num_classes - 1] * ones
    for k in range(num_classes - 2, -1, -1):
        is_k = t == k
        x_t = jnp.where(is_k, rows[k], x_t)
        w_t = jnp.where(is_k, w_ref[k], w_t)
        a_t = jnp.where(is_k, a_ref[k], a_t)

    logp_t = x_t - m - lse                               # log_softmax at target
    ce = -w_t * logp_t                                   # weighted CE, >= 0
    pt = jnp.exp(-ce)
    base = 1.0 - pt

    g = float(gamma)
    if g.is_integer() and g >= 0:
        mod = jnp.ones_like(base)
        for _ in range(int(g)):
            mod = mod * base
    else:
        mod = jnp.exp(g * jnp.log(jnp.maximum(base, 1e-30)))
        mod = jnp.where(base > 0.0, mod, 0.0)            # exact 0 when pt == 1

    focal = a_t * (mod * ce)                             # (R, 128)

    # --- mask padded tail elements of the flattened batch ---
    ridx = lax.broadcasted_iota(jnp.int32, focal.shape, 0)
    lidx = lax.broadcasted_iota(jnp.int32, focal.shape, 1)
    gidx = (i * block_rows + ridx) * _LANES + lidx
    focal = jnp.where(gidx < n_valid, focal, 0.0)

    # --- accumulate per-lane partial sums (single XLU reduce only at the end) ---
    acc_ref[...] += focal

    @pl.when(i == pl.num_programs(0) - 1)
    def _finalize():
        out_ref[0, 0] = jnp.sum(acc_ref[...]) / jnp.float32(n_valid)


def focal_loss(logits, targets, *, gamma=2.0, alpha=None, class_weights=None,
               block_rows=32):
    """FocalLoss forward with reduction='mean' (module default).

    logits: (N, C) float, targets: (N,) int. block_rows*128 batch elements are
    processed per grid step.
    """
    n, c = logits.shape
    w = (jnp.ones((c,), jnp.float32) if class_weights is None
         else jnp.asarray(class_weights, jnp.float32).reshape(c))
    a = (jnp.ones((c,), jnp.float32) if alpha is None
         else jnp.asarray(alpha, jnp.float32).reshape(c))

    # Lane-dense layout: (N, C) -> (C, N) -> pad -> (C, rows, 128); batch fills
    # full (8,128) tiles, the tiny class axis is the leading (unrolled) dim.
    tr = min(int(block_rows), _round_up(-(-n // _LANES), 8))
    tr = max(8, _round_up(tr, 8))
    n_pad = _round_up(n, tr * _LANES)
    rows_total = n_pad // _LANES
    grid = rows_total // tr

    x = jnp.transpose(logits.astype(jnp.float32))                    # (C, N)
    x = jnp.pad(x, ((0, 0), (0, n_pad - n)))                         # (C, n_pad)
    x = x.reshape(c, rows_total, _LANES)                             # (C, R, 128)
    t = jnp.pad(targets.astype(jnp.int32), (0, n_pad - n))
    t = t.reshape(rows_total, _LANES)                                # (R, 128)

    kernel = functools.partial(_focal_loss_kernel, gamma=gamma, n_valid=n,
                               block_rows=tr, num_classes=c)
    out = pl.pallas_call(
        kernel,
        out_shape=jax.ShapeDtypeStruct((1, 1), jnp.float32),
        grid=(grid,),
        in_specs=[
            pl.BlockSpec(memory_space=pltpu.MemorySpace.SMEM),       # class weights (C,)
            pl.BlockSpec(memory_space=pltpu.MemorySpace.SMEM),       # alpha         (C,)
            pl.BlockSpec((c, tr, _LANES), lambda i: (0, i, 0)),      # logits  (C, R, 128)
            pl.BlockSpec((tr, _LANES), lambda i: (i, 0)),            # targets (R, 128)
        ],
        out_specs=pl.BlockSpec(memory_space=pltpu.MemorySpace.SMEM),
        scratch_shapes=[pltpu.VMEM((tr, _LANES), jnp.float32)],
        compiler_params=pltpu.CompilerParams(
            dimension_semantics=("arbitrary",)),
    )(w, a, x, t)
    return out[0, 0]


def _focal_loss_ref(logits, targets, *, gamma=2.0, alpha=None, class_weights=None):
    """Pure-JAX reference mirroring the PyTorch module (sanity check)."""
    n, c = logits.shape
    w = (jnp.ones((c,), jnp.float32) if class_weights is None
         else jnp.asarray(class_weights, jnp.float32))
    logp = jax.nn.log_softmax(logits.astype(jnp.float32), axis=-1)
    logp_t = jnp.take_along_axis(logp, targets[:, None], axis=-1)[:, 0]
    ce = -w[targets] * logp_t
    pt = jnp.exp(-ce)
    focal = (1.0 - pt) ** gamma * ce
    if alpha is not None:
        focal = jnp.asarray(alpha, jnp.float32)[targets] * focal
    return jnp.mean(focal)


if __name__ == "__main__":
    key = jax.random.PRNGKey(0)
    k1, k2, k3, k4 = jax.random.split(key, 4)

    # Small case matching the module defaults (NUM_CLASSES = 3).
    N, C = 8, NUM_CLASSES
    logits = jax.random.normal(k1, (N, C), dtype=jnp.float32) * 2.0
    targets = jax.random.randint(k2, (N,), 0, C, dtype=jnp.int32)

    gamma = 2.0
    alpha = [0.25, 0.5, 0.25]          # per-class alpha (module accepts a list)
    class_weights = [1.0, 2.0, 0.5]    # F.cross_entropy `weight`

    loss = focal_loss(logits, targets, gamma=gamma, alpha=alpha,
                      class_weights=class_weights)
    loss = jax.block_until_ready(loss)
    ref = _focal_loss_ref(logits, targets, gamma=gamma, alpha=alpha,
                          class_weights=class_weights)
    assert jnp.allclose(loss, ref, rtol=1e-4, atol=1e-6), (loss, ref)

    # Multi-block grid + padded-tail masking path (alpha/class_weights = None).
    N2 = 3000
    logits2 = jax.random.normal(k3, (N2, C), dtype=jnp.float32) * 3.0
    targets2 = jax.random.randint(k4, (N2,), 0, C, dtype=jnp.int32)
    loss2 = focal_loss(logits2, targets2, gamma=gamma, block_rows=8)
    loss2 = jax.block_until_ready(loss2)
    ref2 = _focal_loss_ref(logits2, targets2, gamma=gamma)
    assert jnp.allclose(loss2, ref2, rtol=1e-4, atol=1e-6), (loss2, ref2)

    print("KERNEL_OK")
</pallas_src>

<mosaic_0001>
module attributes {stable_mosaic.version = 11 : i64} {
  func.func @_focal_loss_kernel(%arg0: i32, %arg1: memref<3xf32, #tpu.memory_space<smem>>, %arg2: memref<3xf32, #tpu.memory_space<smem>>, %arg3: memref<3x8x128xf32, #tpu.memory_space<vmem>>, %arg4: memref<8x128xi32, #tpu.memory_space<vmem>>, %arg5: memref<1x1xf32, #tpu.memory_space<smem>>, %arg6: memref<8x128xf32, #tpu.memory_space<vmem>>) attributes {dimension_semantics = [#tpu.dimension_semantics<arbitrary>], iteration_bounds = array<i64: 1>, scalar_prefetch = 0 : i64, scratch_operands = 1 : i64, tpu.core_type = #tpu.core_type<tc>, window_params = [{transform_indices = @transform_0, window_bounds = array<i64: 3>}, {transform_indices = @transform_1, window_bounds = array<i64: 3>}, {transform_indices = @transform_2, window_bounds = array<i64: 3, 8, 128>}, {transform_indices = @transform_3, window_bounds = array<i64: 8, 128>}, {transform_indices = @transform_4, window_bounds = array<i64: 1, 1>}]} {
    %c0_i32 = arith.constant 0 : i32
    %0 = arith.cmpi eq, %arg0, %c0_i32 : i32
    %1 = arith.extui %0 : i1 to i32
    %c0_i32_0 = arith.constant 0 : i32
    %2 = arith.cmpi ne, %1, %c0_i32_0 : i32
    scf.if %2 {
      %cst_28 = arith.constant 0.000000e+00 : f32
      %79 = vector.broadcast %cst_28 : f32 to vector<8x128xf32>
      %c0_29 = arith.constant 0 : index
      %c0_30 = arith.constant 0 : index
      %80 = vector.load %arg6[%c0_29, %c0_30] : memref<8x128xf32, #tpu.memory_space<vmem>>, vector<8x128xf32>
      tpu.vector_store %arg6[%c0_29, %c0_30], %79 {strides = array<i32>} : memref<8x128xf32, #tpu.memory_space<vmem>>, vector<8x128xf32>,
    } else {
    }
    %c0 = arith.constant 0 : index
    %c0_1 = arith.constant 0 : index
    %3 = vector.load %arg4[%c0, %c0_1] : memref<8x128xi32, #tpu.memory_space<vmem>>, vector<8x128xi32>
    %c0_2 = arith.constant 0 : index
    %c0_3 = arith.constant 0 : index
    %c0_4 = arith.constant 0 : index
    %4 = vector.load %arg3[%c0_2, %c0_3, %c0_4] : memref<3x8x128xf32, #tpu.memory_space<vmem>>, vector<1x8x128xf32>
    %5 = vector.shape_cast %4 : vector<1x8x128xf32> to vector<8x128xf32>
    %c1 = arith.constant 1 : index
    %c0_5 = arith.constant 0 : index
    %c0_6 = arith.constant 0 : index
    %6 = vector.load %arg3[%c1, %c0_5, %c0_6] : memref<3x8x128xf32, #tpu.memory_space<vmem>>, vector<1x8x128xf32>
    %7 = vector.shape_cast %6 : vector<1x8x128xf32> to vector<8x128xf32>
    %c2 = arith.constant 2 : index
    %c0_7 = arith.constant 0 : index
    %c0_8 = arith.constant 0 : index
    %8 = vector.load %arg3[%c2, %c0_7, %c0_8] : memref<3x8x128xf32, #tpu.memory_space<vmem>>, vector<1x8x128xf32>
    %9 = vector.shape_cast %8 : vector<1x8x128xf32> to vector<8x128xf32>
    %10 = arith.maximumf %5, %7 : vector<8x128xf32>
    %11 = arith.maximumf %10, %9 : vector<8x128xf32>
    %12 = arith.subf %5, %11 : vector<8x128xf32>
    %13 = math.exp %12 : vector<8x128xf32>
    %14 = arith.subf %7, %11 : vector<8x128xf32>
    %15 = math.exp %14 : vector<8x128xf32>
    %16 = arith.addf %13, %15 : vector<8x128xf32>
    %17 = arith.subf %9, %11 : vector<8x128xf32>
    %18 = math.exp %17 : vector<8x128xf32>
    %19 = arith.addf %16, %18 : vector<8x128xf32>
    %20 = math.log %19 : vector<8x128xf32>
    %cst = arith.constant 1.000000e+00 : f32
    %21 = vector.broadcast %cst : f32 to vector<8x128xf32>
    %c2_9 = arith.constant 2 : index
    %22 = memref.load %arg1[%c2_9] : memref<3xf32, #tpu.memory_space<smem>>
    %23 = vector.broadcast %22 : f32 to vector<8x128xf32>
    %24 = arith.mulf %23, %21 : vector<8x128xf32>
    %c2_10 = arith.constant 2 : index
    %25 = memref.load %arg2[%c2_10] : memref<3xf32, #tpu.memory_space<smem>>
    %26 = vector.broadcast %25 : f32 to vector<8x128xf32>
    %27 = arith.mulf %26, %21 : vector<8x128xf32>
    %c1_i32 = arith.constant 1 : i32
    %28 = vector.broadcast %c1_i32 : i32 to vector<8x128xi32>
    %29 = arith.cmpi eq, %3, %28 : vector<8x128xi32>
    %30 = arith.select %29, %7, %9 : vector<8x128xi1>, vector<8x128xf32>
    %c1_11 = arith.constant 1 : index
    %31 = memref.load %arg1[%c1_11] : memref<3xf32, #tpu.memory_space<smem>>
    %32 = vector.broadcast %31 : f32 to vector<8x128xf32>
    %33 = arith.select %29, %32, %24 : vector<8x128xi1>, vector<8x128xf32>
    %c1_12 = arith.constant 1 : index
    %34 = memref.load %arg2[%c1_12] : memref<3xf32, #tpu.memory_space<smem>>
    %35 = vector.broadcast %34 : f32 to vector<8x128xf32>
    %36 = arith.select %29, %35, %27 : vector<8x128xi1>, vector<8x128xf32>
    %c0_i32_13 = arith.constant 0 : i32
    %37 = vector.broadcast %c0_i32_13 : i32 to vector<8x128xi32>
    %38 = arith.cmpi eq, %3, %37 : vector<8x128xi32>
    %39 = arith.select %38, %5, %30 : vector<8x128xi1>, vector<8x128xf32>
    %c0_14 = arith.constant 0 : index
    %40 = memref.load %arg1[%c0_14] : memref<3xf32, #tpu.memory_space<smem>>
    %41 = vector.broadcast %40 : f32 to vector<8x128xf32>
    %42 = arith.select %38, %41, %33 : vector<8x128xi1>, vector<8x128xf32>
    %c0_15 = arith.constant 0 : index
    %43 = memref.load %arg2[%c0_15] : memref<3xf32, #tpu.memory_space<smem>>
    %44 = vector.broadcast %43 : f32 to vector<8x128xf32>
    %45 = arith.select %38, %44, %36 : vector<8x128xi1>, vector<8x128xf32>
    %46 = arith.subf %39, %11 : vector<8x128xf32>
    %47 = arith.subf %46, %20 : vector<8x128xf32>
    %cst_16 = arith.constant 0.000000e+00 : f32
    %48 = vector.broadcast %cst_16 : f32 to vector<8x128xf32>
    %49 = arith.subf %48, %42 : vector<8x128xf32>
    %50 = arith.mulf %49, %47 : vector<8x128xf32>
    %cst_17 = arith.constant 0.000000e+00 : f32
    %51 = vector.broadcast %cst_17 : f32 to vector<8x128xf32>
    %52 = arith.subf %51, %50 : vector<8x128xf32>
    %53 = math.exp %52 : vector<8x128xf32>
    %cst_18 = arith.constant 1.000000e+00 : f32
    %54 = vector.broadcast %cst_18 : f32 to vector<8x128xf32>
    %55 = arith.subf %54, %53 : vector<8x128xf32>
    %cst_19 = arith.constant 1.000000e+00 : f32
    %56 = vector.broadcast %cst_19 : f32 to vector<8x128xf32>
    %57 = arith.mulf %56, %55 : vector<8x128xf32>
    %58 = arith.mulf %57, %55 : vector<8x128xf32>
    %59 = arith.mulf %58, %50 : vector<8x128xf32>
    %60 = arith.mulf %45, %59 : vector<8x128xf32>
    %61 = tpu.iota {dimensions = array<i32: 0>} : vector<8x128xi32>
    %62 = tpu.iota {dimensions = array<i32: 1>} : vector<8x128xi32>
    %c8_i32 = arith.constant 8 : i32
    %63 = arith.muli %arg0, %c8_i32 : i32
    %64 = vector.broadcast %63 : i32 to vector<8x128xi32>
    %65 = arith.addi %64, %61 : vector<8x128xi32>
    %c128_i32 = arith.constant 128 : i32
    %66 = vector.broadcast %c128_i32 : i32 to vector<8x128xi32>
    %67 = arith.muli %65, %66 : vector<8x128xi32>
    %68 = arith.addi %67, %62 : vector<8x128xi32>
    %c8_i32_20 = arith.constant 8 : i32
    %69 = vector.broadcast %c8_i32_20 : i32 to vector<8x128xi32>
    %70 = arith.cmpi slt, %68, %69 : vector<8x128xi32>
    %cst_21 = arith.constant 0.000000e+00 : f32
    %71 = vector.broadcast %cst_21 : f32 to vector<8x128xf32>
    %72 = arith.select %70, %60, %71 : vector<8x128xi1>, vector<8x128xf32>
    %c0_22 = arith.constant 0 : index
    %c0_23 = arith.constant 0 : index
    %73 = vector.load %arg6[%c0_22, %c0_23] : memref<8x128xf32, #tpu.memory_space<vmem>>, vector<8x128xf32>
    %74 = arith.addf %73, %72 : vector<8x128xf32>
    %c0_24 = arith.constant 0 : index
    %c0_25 = arith.constant 0 : index
    %75 = vector.load %arg6[%c0_24, %c0_25] : memref<8x128xf32, #tpu.memory_space<vmem>>, vector<8x128xf32>
    tpu.vector_store %arg6[%c0_24, %c0_25], %74 {strides = array<i32>} : memref<8x128xf32, #tpu.memory_space<vmem>>, vector<8x128xf32>,
    %c0_i32_26 = arith.constant 0 : i32
    %76 = arith.cmpi eq, %arg0, %c0_i32_26 : i32
    %77 = arith.extui %76 : i1 to i32
    %c0_i32_27 = arith.constant 0 : i32
    %78 = arith.cmpi ne, %77, %c0_i32_27 : i32
    scf.if %78 {
      %c0_28 = arith.constant 0 : index
      %c0_29 = arith.constant 0 : index
      %79 = vector.load %arg6[%c0_28, %c0_29] : memref<8x128xf32, #tpu.memory_space<vmem>>, vector<8x128xf32>
      %80 = vector.shape_cast %79 : vector<8x128xf32> to vector<1x8x128xf32>
      %cst_30 = arith.constant dense<0.000000e+00> : vector<1xf32>
      %81 = vector.multi_reduction <add>, %80, %cst_30 [1, 2] : vector<1x8x128xf32> to vector<1xf32>
      %82 = vector.shape_cast %81 : vector<1xf32> to vector<1x1x1xf32>
      %83 = vector.extract %82[0, 0, 0] : f32 from vector<1x1x1xf32>
      %cst_31 = arith.constant 8.000000e+00 : f32
      %84 = arith.divf %83, %cst_31 : f32
      %c0_32 = arith.constant 0 : index
      %c0_33 = arith.constant 0 : index
      %85 = memref.load %arg5[%c0_32, %c0_33] : memref<1x1xf32, #tpu.memory_space<smem>>
      memref.store %84, %arg5[%c0_32, %c0_33] : memref<1x1xf32, #tpu.memory_space<smem>>
    } else {
    }
    return
  }
  func.func @transform_0(%arg0: i32) -> i32 {
    %c0_i32 = arith.constant 0 : i32
    %c0_i32_0 = arith.constant 0 : i32
    return %c0_i32 : i32
  }
  func.func @transform_1(%arg0: i32) -> i32 {
    %c0_i32 = arith.constant 0 : i32
    %c0_i32_0 = arith.constant 0 : i32
    return %c0_i32 : i32
  }
  func.func @transform_2(%arg0: i32) -> (i32, i32, i32) {
    %c0_i32 = arith.constant 0 : i32
    %c0_i32_0 = arith.constant 0 : i32
    %c0_i32_1 = arith.constant 0 : i32
    return %c0_i32, %arg0, %c0_i32_0 : i32, i32, i32
  }
  func.func @transform_3(%arg0: i32) -> (i32, i32) {
    %c0_i32 = arith.constant 0 : i32
    %c0_i32_0 = arith.constant 0 : i32
    return %arg0, %c0_i32 : i32, i32
  }
  func.func @transform_4(%arg0: i32) -> (i32, i32) {
    %c0_i32 = arith.constant 0 : i32
    %c0_i32_0 = arith.constant 0 : i32
    %c0_i32_1 = arith.constant 0 : i32
    return %c0_i32, %c0_i32_0 : i32, i32
  }
}

</mosaic_0001>

<llo_original>
// kernel: tpu_custom_call.1
$region0: #{tpu_custom_call.1}
  #allocation0 [shape = 'u32[]', space=smem, size = 0x4, offset = 0x4, fixed_abs, tag = 'smem constant byte address 0x4 - core index']
  #allocation1 [shape = 'u32[144,128]{1,0:T(1,128)}', space=vmem, size = 0x12000, scoped, tag = 'internal scratch']
  #allocation2 [shape = 'f32[8,128]{1,0:T(8,128)}', space=vmem, size = 0x1000, scoped, tag = 'scratch operand']
  %s0 = inlined_call_operand.hbm [shape: f32[3], index: 0, kind: input, shape index: {}]
  %s1 = inlined_call_operand.vmem [shape: f32[3], index: 1, kind: input, shape index: {}]
  %s2 = inlined_call_operand.hbm [shape: f32[3,8,128], index: 2, kind: input, shape index: {}]
  %s3 = inlined_call_operand.vmem [shape: s32[8,128], index: 3, kind: input, shape index: {}]
  %s4 = inlined_call_operand.hbm [shape: f32[1,1], index: 4, kind: output, shape index: {}]
  %s5 = sld [smem:[#allocation0]]
  $region46: #{tpu_custom_call.1} parent=0
    _
  %s7 = ssub.s32 1, %s5
  %s8 = scalar_select 0, %s7, %s5
  $region1: #{tpu_custom_call.1} parent=0
    #allocation3 [shape = 'u8[512]{0}', space=smem, size = 0x200, scoped, tag = 'input window, operand 0, single buffered']
    #allocation4 [shape = 's32[1]{0}', space=sflag, size = 0x4, scoped, tag = 'scoped memory for tpu_custom_call.1']
    #allocation5 [shape = 's32[1]{0}', space=sflag, size = 0x4, scoped, tag = 'scoped memory for tpu_custom_call.1']
    #allocation6 [shape = 's32[1]{0}', space=sflag, size = 0x4, scoped, tag = 'scoped memory for tpu_custom_call.1']
    #allocation7 [shape = 's32[1]{0}', space=sflag, size = 0x4, scoped, tag = 'scoped memory for tpu_custom_call.1']
    #allocation8 [shape = 'u8[512]{0}', space=smem, size = 0x200, scoped, tag = 'input window, operand 1, single buffered']
    #allocation9 [shape = 'u8[12288]{0}', space=vmem, size = 0x3000, scoped, tag = 'input window, operand 2, single buffered']
    #allocation10 [shape = 'u8[512]{0}', space=smem, size = 0x200, scoped, tag = 'output window, operand 0, single buffered']
    %9 = vsyncpa [#allocation5], 0
    %10 = vsyncpa [#allocation7], 0
    %11 = vsyncpa [#allocation4], 0
    %12 = vsyncpa [#allocation6], 0
    // Predicated region
    $region2: #{tpu_custom_call.1} parent=1 // pred_check
      _
    $region3: #{tpu_custom_call.1} parent=1 // pred_check_branch
      %14 = sbr.rel (0) target = $region5
    $region4: #{tpu_custom_call.1} parent=1 // pred_region
      %s16 = ssub.s32 16, 16
      %17 = vsyncadd [#allocation5], %s16
      %20 = dma.hbm_to_smem %s0, 16, [#allocation3], [#allocation5]
    $region5: #{tpu_custom_call.1} parent=1 // pred_fallthru
      _
    // Predicated region
    $region6: #{tpu_custom_call.1} parent=1 // pred_check
      _
    $region7: #{tpu_custom_call.1} parent=1 // pred_check_branch
      %22 = sbr.rel (0) target = $region9
    $region8: #{tpu_custom_call.1} parent=1 // pred_region
      %s24 = ssub.s32 16, 16
      %25 = vsyncadd [#allocation7], %s24
      %s27 = sshll.u32 %s1, 4
      %s28 = int_to_ptr.vmem [resolvable:$true] %s27
      %30 = dma.vmem_to_smem %s28, 16, [#allocation8], [#allocation7]
    $region9: #{tpu_custom_call.1} parent=1 // pred_fallthru
      _
    // Predicated region
    $region10: #{tpu_custom_call.1} parent=1 // pred_check
      _
    $region11: #{tpu_custom_call.1} parent=1 // pred_check_branch
      %32 = sbr.rel (0) target = $region13
    $region12: #{tpu_custom_call.1} parent=1 // pred_region
      %s34 = ssub.s32 384, 384
      %35 = vsyncadd [#allocation4], %s34
      %s36 = sshll.u32 [#allocation9], 4
      %s37 = int_to_ptr.vmem [resolvable:$true] %s36
      %42 = dma.hbm_to_vmem [thread:$0]  %s2, 384, %s37, [#allocation4], 128, 128, 8
    $region13: #{tpu_custom_call.1} parent=1 // pred_fallthru
      _
    // Predicated region
    $region14: #{tpu_custom_call.1} parent=1 // pred_check
      _
    $region15: #{tpu_custom_call.1} parent=1 // pred_check_branch
      %44 = sbr.rel (0) target = $region17
    $region16: #{tpu_custom_call.1} parent=1 // pred_region
      _
    $region17: #{tpu_custom_call.1} parent=1 // pred_fallthru
      _
    // Predicated region
    $region18: #{tpu_custom_call.1} parent=1 // pred_check
      _
    $region19: #{tpu_custom_call.1} parent=1 // pred_check_branch
      %46 = sbr.rel (0) target = $region21
    $region20: #{tpu_custom_call.1} parent=1 // pred_region
      %47 = dma.done [#allocation5], 16
    $region21: #{tpu_custom_call.1} parent=1 // pred_fallthru
      _
    // Predicated region
    $region22: #{tpu_custom_call.1} parent=1 // pred_check
      _
    $region23: #{tpu_custom_call.1} parent=1 // pred_check_branch
      %49 = sbr.rel (0) target = $region25
    $region24: #{tpu_custom_call.1} parent=1 // pred_region
      %50 = dma.done [#allocation7], 16
    $region25: #{tpu_custom_call.1} parent=1 // pred_fallthru
      _
    // Predicated region
    $region26: #{tpu_custom_call.1} parent=1 // pred_check
      _
    $region27: #{tpu_custom_call.1} parent=1 // pred_check_branch
      %52 = sbr.rel (0) target = $region29
    $region28: #{tpu_custom_call.1} parent=1 // pred_region
      %53 = dma.done [#allocation4], 384
    $region29: #{tpu_custom_call.1} parent=1 // pred_fallthru
      _
    %54 = sfence
    %p55 = scmp.eq.s32.totalorder 0, 0
    // Predicated region
    $region30: #{tpu_custom_call.1} parent=1 // pred_check
      %p56 = pneg %p55
    $region31: #{tpu_custom_call.1} parent=1 // pred_check_branch
      %58 = sbr.rel (%p56) target = $region33
    $region32: #{tpu_custom_call.1} parent=1 // pred_region
      %59 = vst [vmem:[#allocation2] sm:$0xff] 0.0
    $region33: #{tpu_custom_call.1} parent=1 // pred_fallthru
      _
    %v60 = vld [vmem:[%s3] sm:$0xff]
    %v61 = vld [vmem:[#allocation9] sm:$0xff]
    %s62 = scalar_lea.vmem [#allocation9], 8
    %v63 = vld [vmem:[%s62] sm:$0xff]
    %s64 = scalar_lea.vmem [#allocation9], 16
    %v65 = vld [vmem:[%s64] sm:$0xff]
    %v66 = vmax.f32 %v61, %v63
    %v67 = vmax.f32 %v66, %v65
    %v68 = vsub.f32 %v61, %v67
    %v69 = vmul.f32 %v68, 1.442695
    %v70 = vpow.pop %v69
    %v71 = vsub.f32 %v63, %v67
    %v72 = vmul.f32 %v71, 1.442695
    %v73 = vpow.pop %v72
    %v74 = vadd.f32 %v70, %v73
    %v75 = vsub.f32 %v65, %v67
    %v76 = vmul.f32 %v75, 1.442695
    %v77 = vpow.pop %v76
    %v78 = vadd.f32 %v74, %v77
    %v79 = vlog2.pop %v78
    %v80 = vmul.f32 %v79, 0.6931472
    %s81 = sld [smem:[#allocation3 + $0x2]]
    %v82 = vstv %s81
    %s83 = sld [smem:[#allocation8 + $0x2]]
    %v84 = vstv %s83
    %vm85 = vcmp.eq.s32.totalorder %v60, 1
    %v86 = vsel %vm85, %v63, %v65
    %s87 = sld [smem:[#allocation3 + $0x1]]
    %v88 = vstv %s87
    %v89 = vsel %vm85, %v88, %v82
    %s90 = sld [smem:[#allocation8 + $0x1]]
    %v91 = vstv %s90
    %v92 = vsel %vm85, %v91, %v84
    %vm93 = vcmp.eq.s32.totalorder %v60, 0
    %v94 = vsel %vm93, %v61, %v86
    %s95 = sld [smem:[#allocation3]]
    %v96 = vstv %s95
    %v97 = vsel %vm93, %v96, %v89
    %s98 = sld [smem:[#allocation8]]
    %v99 = vstv %s98
    %v100 = vsel %vm93, %v99, %v92
    %v101 = vsub.f32 %v94, %v67
    %v102 = vsub.f32 %v101, %v80
    %v103 = vsub.f32 0.0, %v97
    %v104 = vmul.f32 %v103, %v102
    %v105 = vsub.f32 0.0, %v104
    %v106 = vmul.f32 %v105, 1.442695
    %v107 = vpow.pop %v106
    %v108 = vsub.f32 1.0, %v107
    %v109 = vmul.f32 %v108, %v108
    %v110 = vmul.f32 %v109, %v104
    %v111 = vmul.f32 %v100, %v110
    %v112 = vlaneseq
    %v113 = vshrl.u32 %v112, 7
    %v114 = vlaneseq
    %v115 = vand.u32 %v114, 127
    %s116 = smul.u32 0, 8
    %v117 = vstv %s116
    %v118 = vadd.s32 %v117, %v113
    %v119 = vmul.u32 %v118, 128
    %v120 = vadd.s32 %v119, %v115
    %vm121 = vcmp.lt.s32.totalorder %v120, 8
    %v122 = vsel %vm121, %v111, 0.0
    %v123 = vld [vmem:[#allocation2] sm:$0xff]
    %v124 = vadd.f32 %v123, %v122
    %125 = vst [vmem:[#allocation2] sm:$0xff] %v124
    // Predicated region
    $region34: #{tpu_custom_call.1} parent=1 // pred_check
      %p126 = pneg %p55
    $region35: #{tpu_custom_call.1} parent=1 // pred_check_branch
      %128 = sbr.rel (%p126) target = $region37
    $region36: #{tpu_custom_call.1} parent=1 // pred_region
      %v129 = vld [vmem:[#allocation2] sm:$0xff]
      %130 = vadd.xlane.f32.xlu0 %v129
      %v131 = vpop.xlane.xlu0 %130
      %v132 = vrot.slane %v131, 4
      %v133 = vadd.f32 %v131, %v132
      %v134 = vrot.slane %v133, 2
      %v135 = vadd.f32 %v133, %v134
      %v136 = vrot.slane %v135, 1
      %v137 = vadd.f32 %v135, %v136
      %s138 = vtos %v137
      %v139 = vrcp.pop 8.0
      %s140 = vtos %v139
      %s141 = smul.f32 %s138, %s140
      %s142 = scalar_lea.smem [#allocation10], 0
      %143 = sst [smem:[%s142]] %s141
    $region37: #{tpu_custom_call.1} parent=1 // pred_fallthru
      _
    // Predicated region
    $region38: #{tpu_custom_call.1} parent=1 // pred_check
      _
    $region39: #{tpu_custom_call.1} parent=1 // pred_check_branch
      %145 = sbr.rel (0) target = $region41
    $region40: #{tpu_custom_call.1} parent=1 // pred_region
      %s147 = ssub.s32 16, 16
      %148 = vsyncadd [#allocation6], %s147
      %151 = dma.smem_to_hbm [#allocation10], 16, %s4, [#allocation6]
    $region41: #{tpu_custom_call.1} parent=1 // pred_fallthru
      _
    // Predicated region
    $region42: #{tpu_custom_call.1} parent=1 // pred_check
      _
    $region43: #{tpu_custom_call.1} parent=1 // pred_check_branch
      %153 = sbr.rel (0) target = $region45
    $region44: #{tpu_custom_call.1} parent=1 // pred_region
      %154 = dma.done [#allocation6], 16
    $region45: #{tpu_custom_call.1} parent=1 // pred_fallthru
      _
    %155 = sfence
    %156 = vsyncpa [#allocation4], 1
    %157 = vsyncpa [#allocation5], 1
    %158 = vsyncpa [#allocation6], 1
    %159 = vsyncpa [#allocation7], 1

</llo_original>
